<compile_context>
chip_gen: v7x
topology: tpu7x:2x2x1
jax: 0.10.0
libtpu: 0.0.40
codegen_flags: <defaults>
</compile_context>

<pallas_src>
import jax
import jax.numpy as jnp
from jax.experimental import pallas as pl
from jax.experimental.pallas import tpu as pltpu


LANE = 128            # vreg lane width
SUBLANE = 8           # f32 vreg sublane width
HEAD_P = 128          # lane-dense padded twin-Q head (col 0 = q1, col 1 = q2)
MAX_TILE_ROWS = 1024  # cap on batch rows per grid step (v5e/v6e friendly; <2 MiB VMEM)
MIN_GRID_STEPS = 2    # >= 2 grid steps so ("parallel",) can use both v7x TensorCores


def _round_up(x, m):
    return (x + m - 1) // m * m


def _choose_tiling(batch):
    """Pick (tile_b, n_tiles, batch_p): batch padded to a multiple of 16 only,
    tile sized so padding waste is bounded and the grid has >=2 steps when possible."""
    batch_p = _round_up(batch, 2 * SUBLANE)                     # 16: bf16 sublane packing
    n_tiles = max(MIN_GRID_STEPS, pl.cdiv(batch_p, MAX_TILE_ROWS))
    tile_b = _round_up(pl.cdiv(batch_p, n_tiles), 2 * SUBLANE)
    n_tiles = pl.cdiv(batch_p, tile_b)
    return tile_b, n_tiles, n_tiles * tile_b


def critic_twin_kernel(s_ref, a_ref,
                       w0s_ref, w0a_ref, b0_ref,
                       w1_ref, b1_ref,
                       wq_ref, bq_ref,
                       o_ref):
    """One batch tile: (split) Linear+ReLU -> Linear+ReLU -> fused twin-Q heads."""
    # Layer 0: state @ W0s + action @ W0a + b0 (f32 dots; K is tiny).
    h = (jnp.dot(s_ref[...], w0s_ref[...], preferred_element_type=jnp.float32)
         + jnp.dot(a_ref[...], w0a_ref[...], preferred_element_type=jnp.float32)
         + b0_ref[...])
    h = jnp.maximum(h, 0.0)

    # Layer 1: bf16 operands, f32 accumulation (MXU-native); bias/ReLU in f32.
    h = jnp.dot(h.astype(jnp.bfloat16), w1_ref[...],
                preferred_element_type=jnp.float32) + b1_ref[...]
    h = jnp.maximum(h, 0.0)

    # Twin Q heads packed into one lane-dense 128-wide output (q1 col 0, q2 col 1).
    o_ref[...] = jnp.dot(h.astype(jnp.bfloat16), wq_ref[...],
                         preferred_element_type=jnp.float32) + bq_ref[...]


def prepare_params(params, state_dim, action_dim):
    """One-time padding / dtype casting of the raw parameters (hoisted out of the
    per-call path).  params = [(W0, b0), (W1, b1), (Wq1, bq1), (Wq2, bq2)],
    with W stored (in, out) and b stored (1, out)."""
    (w0, b0), (w1, b1), (wq1, bq1), (wq2, bq2) = params
    mid_dim = w0.shape[1]
    mid_p = _round_up(mid_dim, LANE)
    f32, bf16 = jnp.float32, jnp.bfloat16

    w0 = w0.astype(f32)
    # Padded lanes stay exactly zero through bias + ReLU, so they never contaminate
    # the real columns of later layers.
    w0s = jnp.zeros((state_dim, mid_p), f32).at[:, :mid_dim].set(w0[:state_dim])
    w0a = jnp.zeros((action_dim, mid_p), f32).at[:, :mid_dim].set(w0[state_dim:])
    b0p = jnp.zeros((1, mid_p), f32).at[:, :mid_dim].set(b0.astype(f32))
    w1p = jnp.zeros((mid_p, mid_p), bf16).at[:mid_dim, :mid_dim].set(w1.astype(bf16))
    b1p = jnp.zeros((1, mid_p), f32).at[:, :mid_dim].set(b1.astype(f32))
    wqp = (jnp.zeros((mid_p, HEAD_P), bf16)
           .at[:mid_dim, 0:1].set(wq1.astype(bf16))
           .at[:mid_dim, 1:2].set(wq2.astype(bf16)))
    bqp = (jnp.zeros((1, HEAD_P), f32)
           .at[:, 0:1].set(bq1.astype(f32))
           .at[:, 1:2].set(bq2.astype(f32)))
    return {"w0s": w0s, "w0a": w0a, "b0": b0p,
            "w1": w1p, "b1": b1p, "wq": wqp, "bq": bqp}


def _padded_pallas_call(state, action, prep):
    """Runs the fused kernel and returns the (batch_p, 128) lane-dense padded output."""
    batch, state_dim = state.shape
    action_dim = action.shape[1]
    mid_p = prep["w1"].shape[0]

    tile_b, n_tiles, batch_p = _choose_tiling(batch)
    state = state.astype(jnp.float32)
    action = action.astype(jnp.float32)
    if batch_p != batch:  # pad batch only (zero rows just produce bq, sliced out later)
        pad = ((0, batch_p - batch), (0, 0))
        state = jnp.pad(state, pad)
        action = jnp.pad(action, pad)

    flops = 2 * batch_p * ((state_dim + action_dim) * mid_p
                           + mid_p * mid_p + mid_p * HEAD_P)
    bytes_accessed = (4 * batch_p * (state_dim + action_dim)      # inputs (f32)
                      + 4 * (state_dim + action_dim) * mid_p      # W0 split (f32)
                      + 2 * (mid_p * mid_p + mid_p * HEAD_P)      # W1, Wq (bf16)
                      + 4 * (2 * mid_p + HEAD_P)                  # biases (f32)
                      + 4 * batch_p * HEAD_P)                     # padded output (f32)
    cost = pl.CostEstimate(flops=flops, transcendentals=0,
                           bytes_accessed=bytes_accessed)

    return pl.pallas_call(
        critic_twin_kernel,
        out_shape=jax.ShapeDtypeStruct((batch_p, HEAD_P), jnp.float32),
        grid=(n_tiles,),
        in_specs=[
            pl.BlockSpec((tile_b, state_dim), lambda i: (i, 0)),   # state: batch-tiled
            pl.BlockSpec((tile_b, action_dim), lambda i: (i, 0)),  # action: batch-tiled
            pl.BlockSpec((state_dim, mid_p), lambda i: (0, 0)),    # W0_state: resident
            pl.BlockSpec((action_dim, mid_p), lambda i: (0, 0)),   # W0_action: resident
            pl.BlockSpec((1, mid_p), lambda i: (0, 0)),            # b0: resident
            pl.BlockSpec((mid_p, mid_p), lambda i: (0, 0)),        # W1 (bf16): resident
            pl.BlockSpec((1, mid_p), lambda i: (0, 0)),            # b1: resident
            pl.BlockSpec((mid_p, HEAD_P), lambda i: (0, 0)),       # twin Wq (bf16)
            pl.BlockSpec((1, HEAD_P), lambda i: (0, 0)),           # twin bq
        ],
        out_specs=pl.BlockSpec((tile_b, HEAD_P), lambda i: (i, 0)),
        compiler_params=pltpu.CompilerParams(
            dimension_semantics=("parallel",)),
        cost_estimate=cost,
    )(state, action, prep["w0s"], prep["w0a"], prep["b0"],
      prep["w1"], prep["b1"], prep["wq"], prep["bq"])


@jax.jit
def critic_twin_forward(state, action, prepared):
    """CriticTwin.forward: q1 of shape (batch, 1)."""
    out = _padded_pallas_call(state, action, prepared)
    return out[:state.shape[0], 0:1]


@jax.jit
def critic_twin_get_q1_q2(state, action, prepared):
    """CriticTwin.get_q1_q2: (q1, q2), each (batch, 1) — q2 comes from the same
    fused 128-wide head, so it is essentially free."""
    out = _padded_pallas_call(state, action, prepared)
    b = state.shape[0]
    return out[:b, 0:1], out[:b, 1:2]


def make_params(key, state_dim, action_dim, mid_dim):
    """Deterministic synthetic parameters (shapes match the nn.Linear layers):
    [net_sa[0], net_sa[2], net_q1, net_q2]."""
    dims = [(state_dim + action_dim, mid_dim),
            (mid_dim, mid_dim),
            (mid_dim, 1),
            (mid_dim, 1)]
    params = []
    for (din, dout) in dims:
        key, kw, kb = jax.random.split(key, 3)
        bound = 1.0 / jnp.sqrt(jnp.float32(din))
        w = jax.random.uniform(kw, (din, dout), jnp.float32, -bound, bound)
        b = jax.random.uniform(kb, (1, dout), jnp.float32, -bound, bound)
        params.append((w, b))
    return params


def critic_twin_reference(state, action, params):
    """Pure-JAX f32 reference mirroring CriticTwin.forward / get_q1_q2."""
    (w0, b0), (w1, b1), (wq1, bq1), (wq2, bq2) = params
    x = jnp.concatenate([state, action], axis=1)
    h = jnp.maximum(x @ w0 + b0, 0.0)
    h = jnp.maximum(h @ w1 + b1, 0.0)
    return h @ wq1 + bq1, h @ wq2 + bq2


if __name__ == "__main__":
    # Small shapes consistent with the critic MLP: Q(s, a) over a batch of transitions.
    batch, state_dim, action_dim, mid_dim = 64, 24, 8, 128

    key = jax.random.PRNGKey(0)
    key, ks, ka = jax.random.split(key, 3)
    state = jax.random.normal(ks, (batch, state_dim), jnp.float32)
    action = jax.random.normal(ka, (batch, action_dim), jnp.float32)
    params = make_params(key, state_dim, action_dim, mid_dim)
    prepared = prepare_params(params, state_dim, action_dim)   # one-time pad/cast

    q1 = critic_twin_forward(state, action, prepared)
    q1 = jax.block_until_ready(q1)

    q1_ref, q2_ref = critic_twin_reference(state, action, params)
    assert q1.shape == (batch, 1)
    # bf16 MXU path for layer 1 / Q head -> tolerance loosened vs the f32 reference.
    assert jnp.allclose(q1, q1_ref, atol=2e-2, rtol=2e-2), "q1 mismatch vs reference"

    q1b, q2b = critic_twin_get_q1_q2(state, action, prepared)
    jax.block_until_ready((q1b, q2b))
    assert jnp.allclose(q1b, q1_ref, atol=2e-2, rtol=2e-2), "q1 (twin) mismatch"
    assert jnp.allclose(q2b, q2_ref, atol=2e-2, rtol=2e-2), "q2 (twin) mismatch"

    print("KERNEL_OK")
</pallas_src>

<mosaic_0001>
module attributes {stable_mosaic.version = 11 : i64} {
  func.func @critic_twin_kernel(%arg0: i32, %arg1: memref<32x24xf32, #tpu.memory_space<vmem>>, %arg2: memref<32x8xf32, #tpu.memory_space<vmem>>, %arg3: memref<24x128xf32, #tpu.memory_space<vmem>>, %arg4: memref<8x128xf32, #tpu.memory_space<vmem>>, %arg5: memref<1x128xf32, #tpu.memory_space<vmem>>, %arg6: memref<128x128xbf16, #tpu.memory_space<vmem>>, %arg7: memref<1x128xf32, #tpu.memory_space<vmem>>, %arg8: memref<128x128xbf16, #tpu.memory_space<vmem>>, %arg9: memref<1x128xf32, #tpu.memory_space<vmem>>, %arg10: memref<32x128xf32, #tpu.memory_space<vmem>>) attributes {dimension_semantics = [#tpu.dimension_semantics<parallel>], iteration_bounds = array<i64: 2>, scalar_prefetch = 0 : i64, scratch_operands = 0 : i64, tpu.core_type = #tpu.core_type<tc>, window_params = [{transform_indices = @transform_0, window_bounds = array<i64: 32, 24>}, {transform_indices = @transform_1, window_bounds = array<i64: 32, 8>}, {pipeline_mode = #tpu.pipeline_mode<synchronous>, transform_indices = @transform_2, window_bounds = array<i64: 24, 128>}, {pipeline_mode = #tpu.pipeline_mode<synchronous>, transform_indices = @transform_3, window_bounds = array<i64: 8, 128>}, {pipeline_mode = #tpu.pipeline_mode<synchronous>, transform_indices = @transform_4, window_bounds = array<i64: 1, 128>}, {pipeline_mode = #tpu.pipeline_mode<synchronous>, transform_indices = @transform_5, window_bounds = array<i64: 128, 128>}, {pipeline_mode = #tpu.pipeline_mode<synchronous>, transform_indices = @transform_6, window_bounds = array<i64: 1, 128>}, {pipeline_mode = #tpu.pipeline_mode<synchronous>, transform_indices = @transform_7, window_bounds = array<i64: 128, 128>}, {pipeline_mode = #tpu.pipeline_mode<synchronous>, transform_indices = @transform_8, window_bounds = array<i64: 1, 128>}, {transform_indices = @transform_9, window_bounds = array<i64: 32, 128>}]} {
    %c0 = arith.constant 0 : index
    %c0_0 = arith.constant 0 : index
    %0 = vector.load %arg1[%c0, %c0_0] : memref<32x24xf32, #tpu.memory_space<vmem>>, vector<32x24xf32>
    %c0_1 = arith.constant 0 : index
    %c0_2 = arith.constant 0 : index
    %1 = vector.load %arg3[%c0_1, %c0_2] : memref<24x128xf32, #tpu.memory_space<vmem>>, vector<24x128xf32>
    %cst = arith.constant dense<0.000000e+00> : vector<32x128xf32>
    %2 = tpu.matmul %0, %1, %cst {dimension_numbers = #tpu.dot_dimension_numbers<[1], [0], [0], [1], [0, 0, 1, 1], [], []>} : vector<32x24xf32>, vector<24x128xf32>, vector<32x128xf32> -> vector<32x128xf32>
    %c0_3 = arith.constant 0 : index
    %c0_4 = arith.constant 0 : index
    %3 = vector.load %arg2[%c0_3, %c0_4] : memref<32x8xf32, #tpu.memory_space<vmem>>, vector<32x8xf32>
    %c0_5 = arith.constant 0 : index
    %c0_6 = arith.constant 0 : index
    %4 = vector.load %arg4[%c0_5, %c0_6] : memref<8x128xf32, #tpu.memory_space<vmem>>, vector<8x128xf32>
    %cst_7 = arith.constant dense<0.000000e+00> : vector<32x128xf32>
    %5 = tpu.matmul %3, %4, %cst_7 {dimension_numbers = #tpu.dot_dimension_numbers<[1], [0], [0], [1], [0, 0, 1, 1], [], []>} : vector<32x8xf32>, vector<8x128xf32>, vector<32x128xf32> -> vector<32x128xf32>
    %6 = arith.addf %2, %5 : vector<32x128xf32>
    %c0_8 = arith.constant 0 : index
    %c0_9 = arith.constant 0 : index
    %7 = vector.load %arg5[%c0_8, %c0_9] : memref<1x128xf32, #tpu.memory_space<vmem>>, vector<1x128xf32>
    %8 = vector.broadcast %7 : vector<1x128xf32> to vector<32x128xf32>
    %9 = arith.addf %6, %8 : vector<32x128xf32>
    %cst_10 = arith.constant 0.000000e+00 : f32
    %10 = vector.broadcast %cst_10 : f32 to vector<32x128xf32>
    %11 = arith.maximumf %9, %10 : vector<32x128xf32>
    %12 = arith.truncf %11 : vector<32x128xf32> to vector<32x128xbf16>
    %c0_11 = arith.constant 0 : index
    %c0_12 = arith.constant 0 : index
    %13 = vector.load %arg6[%c0_11, %c0_12] : memref<128x128xbf16, #tpu.memory_space<vmem>>, vector<128x128xbf16>
    %cst_13 = arith.constant dense<0.000000e+00> : vector<32x128xf32>
    %14 = tpu.matmul %12, %13, %cst_13 {dimension_numbers = #tpu.dot_dimension_numbers<[1], [0], [0], [1], [0, 0, 1, 1], [], []>} : vector<32x128xbf16>, vector<128x128xbf16>, vector<32x128xf32> -> vector<32x128xf32>
    %c0_14 = arith.constant 0 : index
    %c0_15 = arith.constant 0 : index
    %15 = vector.load %arg7[%c0_14, %c0_15] : memref<1x128xf32, #tpu.memory_space<vmem>>, vector<1x128xf32>
    %16 = vector.broadcast %15 : vector<1x128xf32> to vector<32x128xf32>
    %17 = arith.addf %14, %16 : vector<32x128xf32>
    %cst_16 = arith.constant 0.000000e+00 : f32
    %18 = vector.broadcast %cst_16 : f32 to vector<32x128xf32>
    %19 = arith.maximumf %17, %18 : vector<32x128xf32>
    %20 = arith.truncf %19 : vector<32x128xf32> to vector<32x128xbf16>
    %c0_17 = arith.constant 0 : index
    %c0_18 = arith.constant 0 : index
    %21 = vector.load %arg8[%c0_17, %c0_18] : memref<128x128xbf16, #tpu.memory_space<vmem>>, vector<128x128xbf16>
    %cst_19 = arith.constant dense<0.000000e+00> : vector<32x128xf32>
    %22 = tpu.matmul %20, %21, %cst_19 {dimension_numbers = #tpu.dot_dimension_numbers<[1], [0], [0], [1], [0, 0, 1, 1], [], []>} : vector<32x128xbf16>, vector<128x128xbf16>, vector<32x128xf32> -> vector<32x128xf32>
    %c0_20 = arith.constant 0 : index
    %c0_21 = arith.constant 0 : index
    %23 = vector.load %arg9[%c0_20, %c0_21] : memref<1x128xf32, #tpu.memory_space<vmem>>, vector<1x128xf32>
    %24 = vector.broadcast %23 : vector<1x128xf32> to vector<32x128xf32>
    %25 = arith.addf %22, %24 : vector<32x128xf32>
    %c0_22 = arith.constant 0 : index
    %c0_23 = arith.constant 0 : index
    %26 = vector.load %arg10[%c0_22, %c0_23] : memref<32x128xf32, #tpu.memory_space<vmem>>, vector<32x128xf32>
    tpu.vector_store %arg10[%c0_22, %c0_23], %25 {strides = array<i32>} : memref<32x128xf32, #tpu.memory_space<vmem>>, vector<32x128xf32>,
    return
  }
  func.func @transform_0(%arg0: i32) -> (i32, i32) {
    %c0_i32 = arith.constant 0 : i32
    %c0_i32_0 = arith.constant 0 : i32
    return %arg0, %c0_i32 : i32, i32
  }
  func.func @transform_1(%arg0: i32) -> (i32, i32) {
    %c0_i32 = arith.constant 0 : i32
    %c0_i32_0 = arith.constant 0 : i32
    return %arg0, %c0_i32 : i32, i32
  }
  func.func @transform_2(%arg0: i32) -> (i32, i32) {
    %c0_i32 = arith.constant 0 : i32
    %c0_i32_0 = arith.constant 0 : i32
    %c0_i32_1 = arith.constant 0 : i32
    return %c0_i32, %c0_i32_0 : i32, i32
  }
  func.func @transform_3(%arg0: i32) -> (i32, i32) {
    %c0_i32 = arith.constant 0 : i32
    %c0_i32_0 = arith.constant 0 : i32
    %c0_i32_1 = arith.constant 0 : i32
    return %c0_i32, %c0_i32_0 : i32, i32
  }
  func.func @transform_4(%arg0: i32) -> (i32, i32) {
    %c0_i32 = arith.constant 0 : i32
    %c0_i32_0 = arith.constant 0 : i32
    %c0_i32_1 = arith.constant 0 : i32
    return %c0_i32, %c0_i32_0 : i32, i32
  }
  func.func @transform_5(%arg0: i32) -> (i32, i32) {
    %c0_i32 = arith.constant 0 : i32
    %c0_i32_0 = arith.constant 0 : i32
    %c0_i32_1 = arith.constant 0 : i32
    return %c0_i32, %c0_i32_0 : i32, i32
  }
  func.func @transform_6(%arg0: i32) -> (i32, i32) {
    %c0_i32 = arith.constant 0 : i32
    %c0_i32_0 = arith.constant 0 : i32
    %c0_i32_1 = arith.constant 0 : i32
    return %c0_i32, %c0_i32_0 : i32, i32
  }
  func.func @transform_7(%arg0: i32) -> (i32, i32) {
    %c0_i32 = arith.constant 0 : i32
    %c0_i32_0 = arith.constant 0 : i32
    %c0_i32_1 = arith.constant 0 : i32
    return %c0_i32, %c0_i32_0 : i32, i32
  }
  func.func @transform_8(%arg0: i32) -> (i32, i32) {
    %c0_i32 = arith.constant 0 : i32
    %c0_i32_0 = arith.constant 0 : i32
    %c0_i32_1 = arith.constant 0 : i32
    return %c0_i32, %c0_i32_0 : i32, i32
  }
  func.func @transform_9(%arg0: i32) -> (i32, i32) {
    %c0_i32 = arith.constant 0 : i32
    %c0_i32_0 = arith.constant 0 : i32
    return %arg0, %c0_i32 : i32, i32
  }
}

</mosaic_0001>

<llo_original>
// kernel: critic_twin_forward.1
$region0: #{critic_twin_forward.1}
  #allocation0 [shape = 'u32[]', space=smem, size = 0x4, offset = 0x4, fixed_abs, tag = 'smem constant byte address 0x4 - core index']
  #allocation1 [shape = 'u32[144,128]{1,0:T(1,128)}', space=vmem, size = 0x12000, scoped, tag = 'internal scratch']
  %s0 = inlined_call_operand.vmem [shape: f32[64,24], index: 0, kind: input, shape index: {}]
  %s1 = inlined_call_operand.vmem [shape: f32[64,8], index: 1, kind: input, shape index: {}]
  %s2 = inlined_call_operand.vmem [shape: f32[24,128], index: 2, kind: input, shape index: {}]
  %s3 = inlined_call_operand.vmem [shape: f32[8,128], index: 3, kind: input, shape index: {}]
  %s4 = inlined_call_operand.vmem [shape: f32[1,128], index: 4, kind: input, shape index: {}]
  %s5 = inlined_call_operand.vmem [shape: bf16[128,128], index: 5, kind: input, shape index: {}]
  %s6 = inlined_call_operand.vmem [shape: f32[1,128], index: 6, kind: input, shape index: {}]
  %s7 = inlined_call_operand.vmem [shape: bf16[128,128], index: 7, kind: input, shape index: {}]
  %s8 = inlined_call_operand.vmem [shape: f32[1,128], index: 8, kind: input, shape index: {}]
  %s9 = inlined_call_operand.vmem [shape: f32[64,128], index: 9, kind: output, shape index: {}]
  %s10 = sld [smem:[#allocation0]]
  $region69: #{critic_twin_forward.1} parent=0
    _
  %s12 = ssub.s32 1, %s10
  %s13 = scalar_select 0, %s12, %s10
  loop: start=0, step=1, limit=4
  $region2: #{critic_twin_forward.1} parent=0 // loop_pre_header
    _
  $region3: #{critic_twin_forward.1} parent=0 // loop_header
    %s15 = sphi 0, %s19
    %p16 = scmp.ge.s32.totalorder %s15, 4
    %s25 = sphi 0, %s27
    %s28 = sphi 0, %s25
    %s29 = sphi 0, %s28
    %s45 = sphi 0, %s29
    %s51 = sphi 0, %s53
    %s54 = sphi 0, %s51
    %s55 = sphi 0, %s54
    %s71 = sphi 0, %s55
    %s75 = sphi 0, %s75
    %s77 = sphi 0, %s75
    %s78 = sphi 0, %s77
    %s92 = sphi 0, %s78
    %s96 = sphi 0, %s96
    %s98 = sphi 0, %s96
    %s99 = sphi 0, %s98
    %s113 = sphi 0, %s99
    %s117 = sphi 0, %s117
    %s119 = sphi 0, %s117
    %s120 = sphi 0, %s119
    %s134 = sphi 0, %s120
    %s138 = sphi 0, %s138
    %s140 = sphi 0, %s138
    %s141 = sphi 0, %s140
    %s155 = sphi 0, %s141
    %s159 = sphi 0, %s159
    %s161 = sphi 0, %s159
    %s162 = sphi 0, %s161
    %s176 = sphi 0, %s162
    %s180 = sphi 0, %s180
    %s182 = sphi 0, %s180
    %s183 = sphi 0, %s182
    %s197 = sphi 0, %s183
    %s201 = sphi 0, %s201
    %s203 = sphi 0, %s201
    %s204 = sphi 0, %s203
    %s218 = sphi 0, %s204
    %s224 = sphi 0, %s226
    %s227 = sphi 0, %s224
    %s228 = sphi 0, %s227
    %s244 = sphi 0, %s228
  $region4: #{critic_twin_forward.1} parent=0 // loop_header_branch
    %18 = sbr.rel (%p16) target = $region8
  $region5: #{critic_twin_forward.1} parent=0 // loop_body
    %s20 = ssub.s32 %s15, 1
    %s21 = ssub.s32 %s15, 2
    %s22 = sadd.s32 %s15, 1
    %s23 = ssub.s32 %s15, %s22
    %p24 = scmp.eq.s32.totalorder %s23, 0
    %s26 = sadd.s32 %s25, 1
    %s27 = scalar_select %p24, %s25, %s26
    %p30 = pneg %p24
    %p31 = scmp.eq.s32.totalorder %s15, 1
    %p32 = por %p30, %p31
    %p33 = scmp.ne.s32.totalorder %s25, %s28
    %p34 = scmp.eq.s32.totalorder %s15, 0
    %p35 = por %p33, %p34
    %p36 = scmp.ne.s32.totalorder %s25, %s28
    %p37 = scmp.eq.s32.totalorder %s20, 1
    %p38 = por %p36, %p37
    %p39 = scmp.ne.s32.totalorder %s28, %s29
    %p40 = scmp.eq.s32.totalorder %s20, 0
    %p41 = por %p39, %p40
    %p42 = scmp.ne.s32.totalorder %s28, %s29
    %p43 = scmp.eq.s32.totalorder %s21, 1
    %p44 = por %p42, %p43
    %p46 = scmp.ne.s32.totalorder %s29, %s45
    %p47 = scmp.eq.s32.totalorder %s21, 0
    %p48 = por %p46, %p47
    %s49 = ssub.s32 %s15, %s22
    %p50 = scmp.eq.s32.totalorder %s49, 0
    %s52 = sadd.s32 %s51, 1
    %s53 = scalar_select %p50, %s51, %s52
    %p56 = pneg %p50
    %p57 = scmp.eq.s32.totalorder %s15, 1
    %p58 = por %p56, %p57
    %p59 = scmp.ne.s32.totalorder %s51, %s54
    %p60 = scmp.eq.s32.totalorder %s15, 0
    %p61 = por %p59, %p60
    %p62 = scmp.ne.s32.totalorder %s51, %s54
    %p63 = scmp.eq.s32.totalorder %s20, 1
    %p64 = por %p62, %p63
    %p65 = scmp.ne.s32.totalorder %s54, %s55
    %p66 = scmp.eq.s32.totalorder %s20, 0
    %p67 = por %p65, %p66
    %p68 = scmp.ne.s32.totalorder %s54, %s55
    %p69 = scmp.eq.s32.totalorder %s21, 1
    %p70 = por %p68, %p69
    %p72 = scmp.ne.s32.totalorder %s55, %s71
    %p73 = scmp.eq.s32.totalorder %s21, 0
    %p74 = por %p72, %p73
    %s76 = sadd.s32 %s75, 1
    %p79 = scmp.eq.s32.totalorder %s15, 1
    %p80 = scmp.ne.s32.totalorder %s75, %s77
    %p81 = scmp.eq.s32.totalorder %s15, 0
    %p82 = por %p80, %p81
    %p83 = scmp.ne.s32.totalorder %s75, %s77
    %p84 = scmp.eq.s32.totalorder %s20, 1
    %p85 = por %p83, %p84
    %p86 = scmp.ne.s32.totalorder %s77, %s78
    %p87 = scmp.eq.s32.totalorder %s20, 0
    %p88 = por %p86, %p87
    %p89 = scmp.ne.s32.totalorder %s77, %s78
    %p90 = scmp.eq.s32.totalorder %s21, 1
    %p91 = por %p89, %p90
    %p93 = scmp.ne.s32.totalorder %s78, %s92
    %p94 = scmp.eq.s32.totalorder %s21, 0
    %p95 = por %p93, %p94
    %s97 = sadd.s32 %s96, 1
    %p100 = scmp.eq.s32.totalorder %s15, 1
    %p101 = scmp.ne.s32.totalorder %s96, %s98
    %p102 = scmp.eq.s32.totalorder %s15, 0
    %p103 = por %p101, %p102
    %p104 = scmp.ne.s32.totalorder %s96, %s98
    %p105 = scmp.eq.s32.totalorder %s20, 1
    %p106 = por %p104, %p105
    %p107 = scmp.ne.s32.totalorder %s98, %s99
    %p108 = scmp.eq.s32.totalorder %s20, 0
    %p109 = por %p107, %p108
    %p110 = scmp.ne.s32.totalorder %s98, %s99
    %p111 = scmp.eq.s32.totalorder %s21, 1
    %p112 = por %p110, %p111
    %p114 = scmp.ne.s32.totalorder %s99, %s113
    %p115 = scmp.eq.s32.totalorder %s21, 0
    %p116 = por %p114, %p115
    %s118 = sadd.s32 %s117, 1
    %p121 = scmp.eq.s32.totalorder %s15, 1
    %p122 = scmp.ne.s32.totalorder %s117, %s119
    %p123 = scmp.eq.s32.totalorder %s15, 0
    %p124 = por %p122, %p123
    %p125 = scmp.ne.s32.totalorder %s117, %s119
    %p126 = scmp.eq.s32.totalorder %s20, 1
    %p127 = por %p125, %p126
    %p128 = scmp.ne.s32.totalorder %s119, %s120
    %p129 = scmp.eq.s32.totalorder %s20, 0
    %p130 = por %p128, %p129
    %p131 = scmp.ne.s32.totalorder %s119, %s120
    %p132 = scmp.eq.s32.totalorder %s21, 1
    %p133 = por %p131, %p132
    %p135 = scmp.ne.s32.totalorder %s120, %s134
    %p136 = scmp.eq.s32.totalorder %s21, 0
    %p137 = por %p135, %p136
    %s139 = sadd.s32 %s138, 1
    %p142 = scmp.eq.s32.totalorder %s15, 1
    %p143 = scmp.ne.s32.totalorder %s138, %s140
    %p144 = scmp.eq.s32.totalorder %s15, 0
    %p145 = por %p143, %p144
    %p146 = scmp.ne.s32.totalorder %s138, %s140
    %p147 = scmp.eq.s32.totalorder %s20, 1
    %p148 = por %p146, %p147
    %p149 = scmp.ne.s32.totalorder %s140, %s141
    %p150 = scmp.eq.s32.totalorder %s20, 0
    %p151 = por %p149, %p150
    %p152 = scmp.ne.s32.totalorder %s140, %s141
    %p153 = scmp.eq.s32.totalorder %s21, 1
    %p154 = por %p152, %p153
    %p156 = scmp.ne.s32.totalorder %s141, %s155
    %p157 = scmp.eq.s32.totalorder %s21, 0
    %p158 = por %p156, %p157
    %s160 = sadd.s32 %s159, 1
    %p163 = scmp.eq.s32.totalorder %s15, 1
    %p164 = scmp.ne.s32.totalorder %s159, %s161
    %p165 = scmp.eq.s32.totalorder %s15, 0
    %p166 = por %p164, %p165
    %p167 = scmp.ne.s32.totalorder %s159, %s161
    %p168 = scmp.eq.s32.totalorder %s20, 1
    %p169 = por %p167, %p168
    %p170 = scmp.ne.s32.totalorder %s161, %s162
    %p171 = scmp.eq.s32.totalorder %s20, 0
    %p172 = por %p170, %p171
    %p173 = scmp.ne.s32.totalorder %s161, %s162
    %p174 = scmp.eq.s32.totalorder %s21, 1
    %p175 = por %p173, %p174
    %p177 = scmp.ne.s32.totalorder %s162, %s176
    %p178 = scmp.eq.s32.totalorder %s21, 0
    %p179 = por %p177, %p178
    %s181 = sadd.s32 %s180, 1
    %p184 = scmp.eq.s32.totalorder %s15, 1
    %p185 = scmp.ne.s32.totalorder %s180, %s182
    %p186 = scmp.eq.s32.totalorder %s15, 0
    %p187 = por %p185, %p186
    %p188 = scmp.ne.s32.totalorder %s180, %s182
    %p189 = scmp.eq.s32.totalorder %s20, 1
    %p190 = por %p188, %p189
    %p191 = scmp.ne.s32.totalorder %s182, %s183
    %p192 = scmp.eq.s32.totalorder %s20, 0
    %p193 = por %p191, %p192
    %p194 = scmp.ne.s32.totalorder %s182, %s183
    %p195 = scmp.eq.s32.totalorder %s21, 1
    %p196 = por %p194, %p195
    %p198 = scmp.ne.s32.totalorder %s183, %s197
    %p199 = scmp.eq.s32.totalorder %s21, 0
    %p200 = por %p198, %p199
    %s202 = sadd.s32 %s201, 1
    %p205 = scmp.eq.s32.totalorder %s15, 1
    %p206 = scmp.ne.s32.totalorder %s201, %s203
    %p207 = scmp.eq.s32.totalorder %s15, 0
    %p208 = por %p206, %p207
    %p209 = scmp.ne.s32.totalorder %s201, %s203
    %p210 = scmp.eq.s32.totalorder %s20, 1
    %p211 = por %p209, %p210
    %p212 = scmp.ne.s32.totalorder %s203, %s204
    %p213 = scmp.eq.s32.totalorder %s20, 0
    %p214 = por %p212, %p213
    %p215 = scmp.ne.s32.totalorder %s203, %s204
    %p216 = scmp.eq.s32.totalorder %s21, 1
    %p217 = por %p215, %p216
    %p219 = scmp.ne.s32.totalorder %s204, %s218
    %p220 = scmp.eq.s32.totalorder %s21, 0
    %p221 = por %p219, %p220
    %s222 = ssub.s32 %s15, %s22
    %p223 = scmp.eq.s32.totalorder %s222, 0
    %s225 = sadd.s32 %s224, 1
    %s226 = scalar_select %p223, %s224, %s225
    %p229 = pneg %p223
    %p230 = scmp.eq.s32.totalorder %s15, 1
    %p231 = por %p229, %p230
    %p232 = scmp.ne.s32.totalorder %s224, %s227
    %p233 = scmp.eq.s32.totalorder %s15, 0
    %p234 = por %p232, %p233
    %p235 = scmp.ne.s32.totalorder %s224, %s227
    %p236 = scmp.eq.s32.totalorder %s20, 1
    %p237 = por %p235, %p236
    %p238 = scmp.ne.s32.totalorder %s227, %s228
    %p239 = scmp.eq.s32.totalorder %s20, 0
    %p240 = por %p238, %p239
    %p241 = scmp.ne.s32.totalorder %s227, %s228
    %p242 = scmp.eq.s32.totalorder %s21, 1
    %p243 = por %p241, %p242
    %p245 = scmp.ne.s32.totalorder %s228, %s244
    %p246 = scmp.eq.s32.totalorder %s21, 0
    %p247 = por %p245, %p246
    %p248 = scmp.le.s32.totalorder 1, %s15
    %p249 = scmp.lt.s32.totalorder %s15, 3
    %p250 = pnand %p248, %p249
    %p251 = pneg %p250
    // Predicated region
    $region9: #{critic_twin_forward.1} parent=5 // pred_check
      _
    $region10: #{critic_twin_forward.1} parent=5 // pred_check_branch
      %253 = sbr.rel (%p250) target = $region12
    $region11: #{critic_twin_forward.1} parent=5 // pred_region
      %s254 = ssub.s32 %s15, 1
      // Predicated region
      $region13: #{critic_twin_forward.1} parent=11 // pred_check
        %p255 = pneg %p88
      $region14: #{critic_twin_forward.1} parent=11 // pred_check_branch
        %257 = sbr.rel (%p255) target = $region16
      $region15: #{critic_twin_forward.1} parent=11 // pred_region
        _
      $region16: #{critic_twin_forward.1} parent=11 // pred_fallthru
        _
      // Predicated region
      $region17: #{critic_twin_forward.1} parent=11 // pred_check
        %p258 = pneg %p109
      $region18: #{critic_twin_forward.1} parent=11 // pred_check_branch
        %260 = sbr.rel (%p258) target = $region20
      $region19: #{critic_twin_forward.1} parent=11 // pred_region
        _
      $region20: #{critic_twin_forward.1} parent=11 // pred_fallthru
        _
      // Predicated region
      $region21: #{critic_twin_forward.1} parent=11 // pred_check
        %p261 = pneg %p130
      $region22: #{critic_twin_forward.1} parent=11 // pred_check_branch
        %263 = sbr.rel (%p261) target = $region24
      $region23: #{critic_twin_forward.1} parent=11 // pred_region
        _
      $region24: #{critic_twin_forward.1} parent=11 // pred_fallthru
        _
      // Predicated region
      $region25: #{critic_twin_forward.1} parent=11 // pred_check
        %p264 = pneg %p151
      $region26: #{critic_twin_forward.1} parent=11 // pred_check_branch
        %266 = sbr.rel (%p264) target = $region28
      $region27: #{critic_twin_forward.1} parent=11 // pred_region
        _
      $region28: #{critic_twin_forward.1} parent=11 // pred_fallthru
        _
      // Predicated region
      $region29: #{critic_twin_forward.1} parent=11 // pred_check
        %p267 = pneg %p172
      $region30: #{critic_twin_forward.1} parent=11 // pred_check_branch
        %269 = sbr.rel (%p267) target = $region32
      $region31: #{critic_twin_forward.1} parent=11 // pred_region
        _
      $region32: #{critic_twin_forward.1} parent=11 // pred_fallthru
        _
      // Predicated region
      $region33: #{critic_twin_forward.1} parent=11 // pred_check
        %p270 = pneg %p193
      $region34: #{critic_twin_forward.1} parent=11 // pred_check_branch
        %272 = sbr.rel (%p270) target = $region36
      $region35: #{critic_twin_forward.1} parent=11 // pred_region
        _
      $region36: #{critic_twin_forward.1} parent=11 // pred_fallthru
        _
      // Predicated region
      $region37: #{critic_twin_forward.1} parent=11 // pred_check
        %p273 = pneg %p214
      $region38: #{critic_twin_forward.1} parent=11 // pred_check_branch
        %275 = sbr.rel (%p273) target = $region40
      $region39: #{critic_twin_forward.1} parent=11 // pred_region
        _
      $region40: #{critic_twin_forward.1} parent=11 // pred_fallthru
        _
    $region12: #{critic_twin_forward.1} parent=5 // pred_fallthru
      _
    %p276 = scmp.lt.s32.totalorder %s15, 2
    // Predicated region
    $region41: #{critic_twin_forward.1} parent=5 // pred_check
      %p277 = pneg %p276
    $region42: #{critic_twin_forward.1} parent=5 // pred_check_branch
      %279 = sbr.rel (%p277) target = $region44
    $region43: #{critic_twin_forward.1} parent=5 // pred_region
      // Predicated region
      $region45: #{critic_twin_forward.1} parent=43 // pred_check
        %p280 = pneg %p35
      $region46: #{critic_twin_forward.1} parent=43 // pred_check_branch
        %282 = sbr.rel (%p280) target = $region48
      $region47: #{critic_twin_forward.1} parent=43 // pred_region
        %s283 = smul.u32 4, %s15
        %p284 = scmp.lt.s32.totalorder %s283, 7
        %s285 = scalar_select %p284, %s283, 7
        %s286 = smul.addr %s285, 8
        %s287 = scalar_lea.vmem %s0, %s286
        %s288 = smul.u32 4, %s15
      $region48: #{critic_twin_forward.1} parent=43 // pred_fallthru
        _
      // Predicated region
      $region49: #{critic_twin_forward.1} parent=43 // pred_check
        %p289 = pneg %p61
      $region50: #{critic_twin_forward.1} parent=43 // pred_check_branch
        %291 = sbr.rel (%p289) target = $region52
      $region51: #{critic_twin_forward.1} parent=43 // pred_region
        %s292 = smul.u32 4, %s15
        %p293 = scmp.lt.s32.totalorder %s292, 7
        %s294 = scalar_select %p293, %s292, 7
        %s295 = smul.addr %s294, 8
        %s296 = scalar_lea.vmem %s1, %s295
        %s297 = smul.u32 4, %s15
      $region52: #{critic_twin_forward.1} parent=43 // pred_fallthru
        _
    $region44: #{critic_twin_forward.1} parent=5 // pred_fallthru
      _
    %p298 = scmp.le.s32.totalorder 1, %s15
    %p299 = scmp.lt.s32.totalorder %s15, 3
    %p300 = pnand %p298, %p299
    %p301 = pneg %p300
    // Predicated region
    $region53: #{critic_twin_forward.1} parent=5 // pred_check
      _
    $region54: #{critic_twin_forward.1} parent=5 // pred_check_branch
      %303 = sbr.rel (%p300) target = $region56
    $region55: #{critic_twin_forward.1} parent=5 // pred_region
      %s304 = ssub.s32 %s15, 1
      %s305 = smul.u32 4, %s20
      %p306 = scmp.lt.s32.totalorder %s305, 7
      %s307 = scalar_select %p306, %s305, 7
      %s308 = smul.addr %s307, 8
      %s309 = scalar_lea.vmem %s0, %s308
      %p310 = pneg %p41
      %p311 = pneg %p38
      %s312 = smul.u32 4, %s20
      %p313 = scmp.lt.s32.totalorder %s312, 7
      %s314 = scalar_select %p313, %s312, 7
      %s315 = smul.addr %s314, 8
      %s316 = scalar_lea.vmem %s1, %s315
      %p317 = pneg %p67
      %p318 = pneg %p64
      %p319 = pneg %p88
      %p320 = pneg %p85
      %p321 = pneg %p109
      %p322 = pneg %p106
      %p323 = pneg %p130
      %p324 = pneg %p127
      %p325 = pneg %p151
      %p326 = pneg %p148
      %p327 = pneg %p172
      %p328 = pneg %p169
      %p329 = pneg %p193
      %p330 = pneg %p190
      %p331 = pneg %p214
      %p332 = pneg %p211
      %p333 = pneg %p240
      %p334 = pneg %p237
      %s335 = smul.u32 4, %s20
      %p336 = scmp.lt.s32.totalorder %s335, 7
      %s337 = scalar_select %p336, %s335, 7
      %s338 = smul.addr %s337, 8
      %s339 = scalar_lea.vmem %s9, %s338
      %s340 = smul.u32 4, %s20
      %p341 = scmp.lt.s32.totalorder %s340, 7
      %s342 = scalar_select %p341, %s340, 7
      %s343 = smul.addr %s342, 8
      %s344 = scalar_lea.vmem %s0, %s343
      %s345 = smul.u32 4, %s20
      %s346 = smul.u32 4, %s20
      %p347 = scmp.lt.s32.totalorder %s346, 7
      %s348 = scalar_select %p347, %s346, 7
      %s349 = smul.addr %s348, 8
      %s350 = scalar_lea.vmem %s1, %s349
      %s351 = smul.u32 4, %s20
      %s352 = smul.u32 4, %s20
      %p353 = scmp.lt.s32.totalorder %s352, 7
      %s354 = scalar_select %p353, %s352, 7
      %s355 = smul.addr %s354, 8
      %s356 = scalar_lea.vmem %s9, %s355
      %s357 = smul.u32 4, %s20
      %v359 = vld [vmem:[%s344] sm:$0xff]
      %v360 = vld [vmem:[%s344 + $0x8] sm:$0xff]
      %v361 = vld [vmem:[%s344 + $0x10] sm:$0xff]
      %v362 = vld [vmem:[%s344 + $0x18] sm:$0xff]
      %v363 = vld [vmem:[%s2] sm:$0xff]
      %v364 = vld [vmem:[%s2 + $0x8] sm:$0xff]
      %v365 = vld [vmem:[%s2 + $0x10] sm:$0xff]
      %v366 = vld [vmem:[%s350] sm:$0xff]
      %v367 = vld [vmem:[%s350 + $0x8] sm:$0xff]
      %v368 = vld [vmem:[%s350 + $0x10] sm:$0xff]
      %v369 = vld [vmem:[%s350 + $0x18] sm:$0xff]
      %v370 = vld [vmem:[%s3] sm:$0xff]
      %vm371 = vcmask 64512
      %v373 = vsel %vm371, %v366, 0
      %v376 = vsel %vm371, %v367, 0
      %v379 = vsel %vm371, %v368, 0
      %v382 = vsel %vm371, %v369, 0
      %384 = vmatprep.subr.mxu0 0.0
      %385 = vmatpush1.msra.mxu0 %v370
      %386 = vmatprep.subr.mxu0 0.0
      %387 = vmatpush1.msra.mxu0 0.0
      %388 = vmatprep.subr.mxu0 0.0
      %389 = vmatpush1.msra.mxu0 0.0
      %390 = vmatprep.subr.mxu0 0.0
      %391 = vmatpush1.msra.mxu0 0.0
      %392 = vmatprep.subr.mxu0 0.0
      %393 = vmatpush1.msra.mxu0 0.0
      %394 = vmatprep.subr.mxu0 0.0
      %395 = vmatpush1.msra.mxu0 0.0
      %396 = vmatprep.subr.mxu0 0.0
      %397 = vmatpush1.msra.mxu0 0.0
      %398 = vmatprep.subr.mxu0 0.0
      %399 = vmatpush1.msra.mxu0 0.0
      %400 = vmatprep.subr.mxu0 0.0
      %401 = vmatpush1.msra.mxu0 0.0
      %402 = vmatprep.subr.mxu0 0.0
      %403 = vmatpush1.msra.mxu0 0.0
      %404 = vmatprep.subr.mxu0 0.0
      %405 = vmatpush1.msra.mxu0 0.0
      %406 = vmatprep.subr.mxu0 0.0
      %407 = vmatpush1.msra.mxu0 0.0
      %408 = vmatprep.subr.mxu0 0.0
      %409 = vmatpush1.msra.mxu0 0.0
      %410 = vmatprep.subr.mxu0 0.0
      %411 = vmatpush1.msra.mxu0 0.0
      %412 = vmatprep.subr.mxu0 0.0
      %413 = vmatpush1.msra.mxu0 0.0
      %414 = vmatprep.subr.mxu0 0.0
      %415 = vmatpush1.msra.mxu0 0.0
      %416 = vmatprep.subr.mxu0 0.0
      %417 = vmatpush1.msra.mxu0 0.0
      %418 = vmatprep.subr.mxu0 0.0
      %419 = vmatpush1.msra.mxu0 0.0
      %420 = vmatprep.subr.mxu0 0.0
      %421 = vmatpush1.msra.mxu0 0.0
      %422 = vmatprep.subr.mxu0 0.0
      %423 = vmatpush1.msra.mxu0 0.0
      %424 = vmatprep.subr.mxu0 0.0
      %425 = vmatpush1.msra.mxu0 0.0
      %426 = vmatprep.subr.mxu0 0.0
      %427 = vmatpush1.msra.mxu0 0.0
      %428 = vmatprep.subr.mxu0 0.0
      %429 = vmatpush1.msra.mxu0 0.0
      %430 = vmatprep.subr.mxu0 0.0
      %431 = vmatpush1.msra.mxu0 0.0
      %432 = vmatprep.subr.mxu0 0.0
      %433 = vmatpush1.msra.mxu0 0.0
      %434 = vmatprep.subr.mxu0 0.0
      %435 = vmatpush1.msra.mxu0 0.0
      %436 = vmatprep.subr.mxu0 0.0
      %437 = vmatpush1.msra.mxu0 0.0
      %438 = vmatprep.subr.mxu0 0.0
      %439 = vmatpush1.msra.mxu0 0.0
      %440 = vmatprep.subr.mxu0 0.0
      %441 = vmatpush1.msra.mxu0 0.0
      %442 = vmatprep.subr.mxu0 0.0
      %443 = vmatpush1.msra.mxu0 0.0
      %444 = vmatprep.subr.mxu0 0.0
      %445 = vmatpush1.msra.mxu0 0.0
      %446 = vmatprep.subr.mxu0 0.0
      %447 = vmatpush1.msra.mxu0 0.0
      %448 = vmatprep.mubr.f32.mxu0 0.0
      %449 = vmatmul.mubr.f32.gmra.mrb[0].mxu0 %v373
      %v450 = vpop.f32.mrb[0].mxu0
      %v451 = vadd.f32 0.0, %v450
      %v452 = vpop.f32.mrb[0].mxu0
      %453 = vmatprep.mubr.f32.mxu0 0.0
      %454 = vmatmul.mubr.f32.gmra.mrb[0].mxu0 %v376
      %v455 = vpop.f32.mrb[0].mxu0
      %v456 = vadd.f32 0.0, %v455
      %v457 = vpop.f32.mrb[0].mxu0
      %458 = vmatprep.mubr.f32.mxu0 0.0
      %459 = vmatmul.mubr.f32.gmra.mrb[0].mxu0 %v379
      %v460 = vpop.f32.mrb[0].mxu0
      %v461 = vadd.f32 0.0, %v460
      %v462 = vpop.f32.mrb[0].mxu0
      %463 = vmatprep.mubr.f32.mxu0 0.0
      %464 = vmatmul.mubr.f32.gmra.mrb[0].mxu0 %v382
      %v465 = vpop.f32.mrb[0].mxu0
      %v466 = vadd.f32 0.0, %v465
      %v467 = vpop.f32.mrb[0].mxu0
      %468 = vdwg.mxu0
      %vm469 = vcmask 195584
      %v471 = vsel %vm469, %v359, 0
      %v474 = vsel %vm469, %v360, 0
      %v477 = vsel %vm469, %v361, 0
      %v480 = vsel %vm469, %v362, 0
      %482 = vmatprep.subr.mxu0 0.0
      %483 = vmatpush1.msra.mxu0 %v363
      %484 = vmatprep.subr.mxu0 0.0
      %485 = vmatpush1.msra.mxu0 %v364
      %486 = vmatprep.subr.mxu0 0.0
      %487 = vmatpush1.msra.mxu0 %v365
      %488 = vmatprep.subr.mxu0 0.0
      %489 = vmatpush1.msra.mxu0 0.0
      %490 = vmatprep.subr.mxu0 0.0
      %491 = vmatpush1.msra.mxu0 0.0
      %492 = vmatprep.subr.mxu0 0.0
      %493 = vmatpush1.msra.mxu0 0.0
      %494 = vmatprep.subr.mxu0 0.0
      %495 = vmatpush1.msra.mxu0 0.0
      %496 = vmatprep.subr.mxu0 0.0
      %497 = vmatpush1.msra.mxu0 0.0
      %498 = vmatprep.subr.mxu0 0.0
      %499 = vmatpush1.msra.mxu0 0.0
      %500 = vmatprep.subr.mxu0 0.0
      %501 = vmatpush1.msra.mxu0 0.0
      %502 = vmatprep.subr.mxu0 0.0
      %503 = vmatpush1.msra.mxu0 0.0
      %504 = vmatprep.subr.mxu0 0.0
      %505 = vmatpush1.msra.mxu0 0.0
      %506 = vmatprep.subr.mxu0 0.0
      %507 = vmatpush1.msra.mxu0 0.0
      %508 = vmatprep.subr.mxu0 0.0
      %509 = vmatpush1.msra.mxu0 0.0
      %510 = vmatprep.subr.mxu0 0.0
      %511 = vmatpush1.msra.mxu0 0.0
      %512 = vmatprep.subr.mxu0 0.0
      %513 = vmatpush1.msra.mxu0 0.0
      %514 = vmatprep.subr.mxu0 0.0
      %515 = vmatpush1.msra.mxu0 0.0
      %516 = vmatprep.subr.mxu0 0.0
      %517 = vmatpush1.msra.mxu0 0.0
      %518 = vmatprep.subr.mxu0 0.0
      %519 = vmatpush1.msra.mxu0 0.0
      %520 = vmatprep.subr.mxu0 0.0
      %521 = vmatpush1.msra.mxu0 0.0
      %522 = vmatprep.subr.mxu0 0.0
      %523 = vmatpush1.msra.mxu0 0.0
      %524 = vmatprep.subr.mxu0 0.0
      %525 = vmatpush1.msra.mxu0 0.0
      %526 = vmatprep.subr.mxu0 0.0
      %527 = vmatpush1.msra.mxu0 0.0
      %528 = vmatprep.subr.mxu0 0.0
      %529 = vmatpush1.msra.mxu0 0.0
      %530 = vmatprep.subr.mxu0 0.0
      %531 = vmatpush1.msra.mxu0 0.0
      %532 = vmatprep.subr.mxu0 0.0
      %533 = vmatpush1.msra.mxu0 0.0
      %534 = vmatprep.subr.mxu0 0.0
      %535 = vmatpush1.msra.mxu0 0.0
      %536 = vmatprep.subr.mxu0 0.0
      %537 = vmatpush1.msra.mxu0 0.0
      %538 = vmatprep.subr.mxu0 0.0
      %539 = vmatpush1.msra.mxu0 0.0
      %540 = vmatprep.subr.mxu0 0.0
      %541 = vmatpush1.msra.mxu0 0.0
      %542 = vmatprep.subr.mxu0 0.0
      %543 = vmatpush1.msra.mxu0 0.0
      %544 = vmatprep.subr.mxu0 0.0
      %545 = vmatpush1.msra.mxu0 0.0
      %546 = vmatprep.mubr.f32.mxu0 0.0
      %547 = vmatmul.mubr.f32.gmra.mrb[0].mxu0 %v471
      %v548 = vpop.f32.mrb[0].mxu0
      %v549 = vadd.f32 %v451, %v548
      %v550 = vpop.f32.mrb[0].mxu0
      %551 = vmatprep.mubr.f32.mxu0 0.0
      %552 = vmatmul.mubr.f32.gmra.mrb[0].mxu0 %v474
      %v553 = vpop.f32.mrb[0].mxu0
      %v554 = vadd.f32 %v456, %v553
      %v555 = vpop.f32.mrb[0].mxu0
      %556 = vmatprep.mubr.f32.mxu0 0.0
      %557 = vmatmul.mubr.f32.gmra.mrb[0].mxu0 %v477
      %v558 = vpop.f32.mrb[0].mxu0
      %v559 = vadd.f32 %v461, %v558
      %v560 = vpop.f32.mrb[0].mxu0
      %561 = vmatprep.mubr.f32.mxu0 0.0
      %562 = vmatmul.mubr.f32.gmra.mrb[0].mxu0 %v480
      %v563 = vpop.f32.mrb[0].mxu0
      %v564 = vadd.f32 %v466, %v563
      %v565 = vpop.f32.mrb[0].mxu0
      %566 = vdwg.mxu0
      %v567 = vld [vmem:[%s4] sm:$0x1]
      %v569 = vlaneseq
      %v570 = vshrl.u32 %v569, 7
      %v571 = vsub.s32 0, %v570
      %v572 = vrot.slane %v567, %v571
      %v574 = vadd.f32 %v549, %v572
      %v575 = vadd.f32 %v554, %v572
      %v576 = vadd.f32 %v559, %v572
      %v577 = vadd.f32 %v564, %v572
      %v578 = vmax.f32 %v574, 0.0
      %v579 = vmax.f32 %v575, 0.0
      %v580 = vmax.f32 %v576, 0.0
      %v581 = vmax.f32 %v577, 0.0
      %v582 = vpack.c.bf16 %v579, %v578
      %v583 = vpack.c.bf16 %v581, %v580
      %v584 = vld [vmem:[%s5] sm:$0xf]
      %v585 = vld [vmem:[%s5 + $0x4] sm:$0xf]
      %v586 = vld [vmem:[%s5 + $0x8] sm:$0xf]
      %v587 = vld [vmem:[%s5 + $0xc] sm:$0xf]
      %v588 = vld [vmem:[%s5 + $0x10] sm:$0xf]
      %v589 = vld [vmem:[%s5 + $0x14] sm:$0xf]
      %v590 = vld [vmem:[%s5 + $0x18] sm:$0xf]
      %v591 = vld [vmem:[%s5 + $0x1c] sm:$0xf]
      %v592 = vld [vmem:[%s5 + $0x20] sm:$0xf]
      %v593 = vld [vmem:[%s5 + $0x24] sm:$0xf]
      %v594 = vld [vmem:[%s5 + $0x28] sm:$0xf]
      %v595 = vld [vmem:[%s5 + $0x2c] sm:$0xf]
      %v596 = vld [vmem:[%s5 + $0x30] sm:$0xf]
      %v597 = vld [vmem:[%s5 + $0x34] sm:$0xf]
      %v598 = vld [vmem:[%s5 + $0x38] sm:$0xf]
      %v599 = vld [vmem:[%s5 + $0x3c] sm:$0xf]
      %v600 = vld [vmem:[%s6] sm:$0x1]
      %v602 = vlaneseq
      %v603 = vshrl.u32 %v602, 7
      %v604 = vsub.s32 0, %v603
      %v605 = vrot.slane %v600, %v604
      %v623 = vunpack.c.l.b16 %v584
      %v624 = vunpack.c.l.b16 %v585
      %v625 = vunpack.c.l.b16 %v586
      %v626 = vunpack.c.l.b16 %v587
      %v627 = vunpack.c.l.b16 %v588
      %v628 = vunpack.c.l.b16 %v589
      %v629 = vunpack.c.l.b16 %v590
      %v630 = vunpack.c.l.b16 %v591
      %v631 = vunpack.c.l.b16 %v592
      %v632 = vunpack.c.l.b16 %v593
      %v633 = vunpack.c.l.b16 %v594
      %v634 = vunpack.c.l.b16 %v595
      %v635 = vunpack.c.l.b16 %v596
      %v636 = vunpack.c.l.b16 %v597
      %v637 = vunpack.c.l.b16 %v598
      %v638 = vunpack.c.l.b16 %v599
      %v639 = vpack.c.b16 %v624, %v623
      %v640 = vpack.c.b16 %v626, %v625
      %v641 = vpack.c.b16 %v628, %v627
      %v642 = vpack.c.b16 %v630, %v629
      %v643 = vpack.c.b16 %v632, %v631
      %v644 = vpack.c.b16 %v634, %v633
      %v645 = vpack.c.b16 %v636, %v635
      %v646 = vpack.c.b16 %v638, %v637
      %655 = vmatprep.subr.bf16.mxu0 0
      %656 = vmatpush1.bf16.msra.mxu0 %v639
      %657 = vmatprep.subr.bf16.mxu0 0
      %658 = vmatpush1.bf16.msra.mxu0 %v640
      %659 = vmatprep.subr.bf16.mxu0 0
      %660 = vmatpush1.bf16.msra.mxu0 %v641
      %661 = vmatprep.subr.bf16.mxu0 0
      %662 = vmatpush1.bf16.msra.mxu0 %v642
      %663 = vmatprep.subr.bf16.mxu0 0
      %664 = vmatpush1.bf16.msra.mxu0 %v643
      %665 = vmatprep.subr.bf16.mxu0 0
      %666 = vmatpush1.bf16.msra.mxu0 %v644
      %667 = vmatprep.subr.bf16.mxu0 0
      %668 = vmatpush1.bf16.msra.mxu0 %v645
      %669 = vmatprep.subr.bf16.mxu0 0
      %670 = vmatpush1.bf16.msra.mxu0 %v646
      %671 = vmatprep.subr.bf16.mxu0 0
      %672 = vmatpush1.bf16.msra.mxu0 0
      %673 = vmatprep.subr.bf16.mxu0 0
      %674 = vmatpush1.bf16.msra.mxu0 0
      %675 = vmatprep.subr.bf16.mxu0 0
      %676 = vmatpush1.bf16.msra.mxu0 0
      %677 = vmatprep.subr.bf16.mxu0 0
      %678 = vmatpush1.bf16.msra.mxu0 0
      %679 = vmatprep.subr.bf16.mxu0 0
      %680 = vmatpush1.bf16.msra.mxu0 0
      %681 = vmatprep.subr.bf16.mxu0 0
      %682 = vmatpush1.bf16.msra.mxu0 0
      %683 = vmatprep.subr.bf16.mxu0 0
      %684 = vmatpush1.bf16.msra.mxu0 0
      %685 = vmatprep.subr.bf16.mxu0 0
      %686 = vmatpush1.bf16.msra.mxu0 0
      %687 = vmatprep.mubr.bf16.mxu0 0
      %688 = vmatmul.mubr.bf16.gmra.mrb[0].mxu0 %v582
      %v689 = vpop.f32.mrb[0].mxu0
      %v690 = vadd.f32 %v605, %v689
      %v691 = vpop.f32.mrb[0].mxu0
      %v692 = vpop.f32.mrb[0].mxu0
      %v693 = vadd.f32 %v605, %v692
      %v694 = vpop.f32.mrb[0].mxu0
      %695 = vmatprep.mubr.bf16.mxu0 0
      %696 = vmatmul.mubr.bf16.gmra.mrb[0].mxu0 %v583
      %v697 = vpop.f32.mrb[0].mxu0
      %v698 = vadd.f32 %v605, %v697
      %v699 = vpop.f32.mrb[0].mxu0
      %v700 = vpop.f32.mrb[0].mxu0
      %v701 = vadd.f32 %v605, %v700
      %v702 = vpop.f32.mrb[0].mxu0
      %703 = vdwg.mxu0
      %v704 = vmax.f32 %v690, 0.0
      %v705 = vmax.f32 %v693, 0.0
      %v706 = vmax.f32 %v698, 0.0
      %v707 = vmax.f32 %v701, 0.0
      %v708 = vpack.c.bf16 %v705, %v704
      %v709 = vpack.c.bf16 %v707, %v706
      %v710 = vld [vmem:[%s7] sm:$0xf]
      %v711 = vld [vmem:[%s7 + $0x4] sm:$0xf]
      %v712 = vld [vmem:[%s7 + $0x8] sm:$0xf]
      %v713 = vld [vmem:[%s7 + $0xc] sm:$0xf]
      %v714 = vld [vmem:[%s7 + $0x10] sm:$0xf]
      %v715 = vld [vmem:[%s7 + $0x14] sm:$0xf]
      %v716 = vld [vmem:[%s7 + $0x18] sm:$0xf]
      %v717 = vld [vmem:[%s7 + $0x1c] sm:$0xf]
      %v718 = vld [vmem:[%s7 + $0x20] sm:$0xf]
      %v719 = vld [vmem:[%s7 + $0x24] sm:$0xf]
      %v720 = vld [vmem:[%s7 + $0x28] sm:$0xf]
      %v721 = vld [vmem:[%s7 + $0x2c] sm:$0xf]
      %v722 = vld [vmem:[%s7 + $0x30] sm:$0xf]
      %v723 = vld [vmem:[%s7 + $0x34] sm:$0xf]
      %v724 = vld [vmem:[%s7 + $0x38] sm:$0xf]
      %v725 = vld [vmem:[%s7 + $0x3c] sm:$0xf]
      %v726 = vld [vmem:[%s8] sm:$0x1]
      %v728 = vlaneseq
      %v729 = vshrl.u32 %v728, 7
      %v730 = vsub.s32 0, %v729
      %v731 = vrot.slane %v726, %v730
      %v749 = vunpack.c.l.b16 %v710
      %v750 = vunpack.c.l.b16 %v711
      %v751 = vunpack.c.l.b16 %v712
      %v752 = vunpack.c.l.b16 %v713
      %v753 = vunpack.c.l.b16 %v714
      %v754 = vunpack.c.l.b16 %v715
      %v755 = vunpack.c.l.b16 %v716
      %v756 = vunpack.c.l.b16 %v717
      %v757 = vunpack.c.l.b16 %v718
      %v758 = vunpack.c.l.b16 %v719
      %v759 = vunpack.c.l.b16 %v720
      %v760 = vunpack.c.l.b16 %v721
      %v761 = vunpack.c.l.b16 %v722
      %v762 = vunpack.c.l.b16 %v723
      %v763 = vunpack.c.l.b16 %v724
      %v764 = vunpack.c.l.b16 %v725
      %v765 = vpack.c.b16 %v750, %v749
      %v766 = vpack.c.b16 %v752, %v751
      %v767 = vpack.c.b16 %v754, %v753
      %v768 = vpack.c.b16 %v756, %v755
      %v769 = vpack.c.b16 %v758, %v757
      %v770 = vpack.c.b16 %v760, %v759
      %v771 = vpack.c.b16 %v762, %v761
      %v772 = vpack.c.b16 %v764, %v763
      %781 = vmatprep.subr.bf16.mxu0 0
      %782 = vmatpush1.bf16.msra.mxu0 %v765
      %783 = vmatprep.subr.bf16.mxu0 0
      %784 = vmatpush1.bf16.msra.mxu0 %v766
      %785 = vmatprep.subr.bf16.mxu0 0
      %786 = vmatpush1.bf16.msra.mxu0 %v767
      %787 = vmatprep.subr.bf16.mxu0 0
      %788 = vmatpush1.bf16.msra.mxu0 %v768
      %789 = vmatprep.subr.bf16.mxu0 0
      %790 = vmatpush1.bf16.msra.mxu0 %v769
      %791 = vmatprep.subr.bf16.mxu0 0
      %792 = vmatpush1.bf16.msra.mxu0 %v770
      %793 = vmatprep.subr.bf16.mxu0 0
      %794 = vmatpush1.bf16.msra.mxu0 %v771
      %795 = vmatprep.subr.bf16.mxu0 0
      %796 = vmatpush1.bf16.msra.mxu0 %v772
      %797 = vmatprep.subr.bf16.mxu0 0
      %798 = vmatpush1.bf16.msra.mxu0 0
      %799 = vmatprep.subr.bf16.mxu0 0
      %800 = vmatpush1.bf16.msra.mxu0 0
      %801 = vmatprep.subr.bf16.mxu0 0
      %802 = vmatpush1.bf16.msra.mxu0 0
      %803 = vmatprep.subr.bf16.mxu0 0
      %804 = vmatpush1.bf16.msra.mxu0 0
      %805 = vmatprep.subr.bf16.mxu0 0
      %806 = vmatpush1.bf16.msra.mxu0 0
      %807 = vmatprep.subr.bf16.mxu0 0
      %808 = vmatpush1.bf16.msra.mxu0 0
      %809 = vmatprep.subr.bf16.mxu0 0
      %810 = vmatpush1.bf16.msra.mxu0 0
      %811 = vmatprep.subr.bf16.mxu0 0
      %812 = vmatpush1.bf16.msra.mxu0 0
      %813 = vmatprep.mubr.bf16.mxu0 0
      %814 = vmatmul.mubr.bf16.gmra.mrb[0].mxu0 %v708
      %v815 = vpop.f32.mrb[0].mxu0
      %v816 = vadd.f32 %v731, %v815
      %v817 = vpop.f32.mrb[0].mxu0
      %v818 = vpop.f32.mrb[0].mxu0
      %v819 = vadd.f32 %v731, %v818
      %v820 = vpop.f32.mrb[0].mxu0
      %821 = vmatprep.mubr.bf16.mxu0 0
      %822 = vmatmul.mubr.bf16.gmra.mrb[0].mxu0 %v709
      %v823 = vpop.f32.mrb[0].mxu0
      %v824 = vadd.f32 %v731, %v823
      %v825 = vpop.f32.mrb[0].mxu0
      %v826 = vpop.f32.mrb[0].mxu0
      %v827 = vadd.f32 %v731, %v826
      %v828 = vpop.f32.mrb[0].mxu0
      %829 = vdwg.mxu0
      %830 = vst [vmem:[%s356] sm:$0xff] %v816
      %831 = vst [vmem:[%s356 + $0x8] sm:$0xff] %v819
      %832 = vst [vmem:[%s356 + $0x10] sm:$0xff] %v824
      %833 = vst [vmem:[%s356 + $0x18] sm:$0xff] %v827
      %s834 = smul.u32 4, %s20
      %p835 = scmp.lt.s32.totalorder %s834, 7
      %s836 = scalar_select %p835, %s834, 7
      %s837 = smul.addr %s836, 8
      %s838 = scalar_lea.vmem %s9, %s837
      // Predicated region
      $region57: #{critic_twin_forward.1} parent=55 // pred_check
        %p839 = pneg %p237
      $region58: #{critic_twin_forward.1} parent=55 // pred_check_branch
        %841 = sbr.rel (%p839) target = $region60
      $region59: #{critic_twin_forward.1} parent=55 // pred_region
        %s842 = smul.u32 4, %s20
      $region60: #{critic_twin_forward.1} parent=55 // pred_fallthru
        _
    $region56: #{critic_twin_forward.1} parent=5 // pred_fallthru
      _
    %p843 = scmp.le.s32.totalorder 2, %s15
    // Predicated region
    $region61: #{critic_twin_forward.1} parent=5 // pred_check
      %p844 = pneg %p843
    $region62: #{critic_twin_forward.1} parent=5 // pred_check_branch
      %846 = sbr.rel (%p844) target = $region64
    $region63: #{critic_twin_forward.1} parent=5 // pred_region
      %s847 = ssub.s32 %s15, 2
      // Predicated region
      $region65: #{critic_twin_forward.1} parent=63 // pred_check
        %p848 = pneg %p243
      $region66: #{critic_twin_forward.1} parent=63 // pred_check_branch
        %850 = sbr.rel (%p848) target = $region68
      $region67: #{critic_twin_forward.1} parent=63 // pred_region
        %s851 = smul.u32 4, %s21
        %p852 = scmp.lt.s32.totalorder %s851, 7
        %s853 = scalar_select %p852, %s851, 7
        %s854 = smul.addr %s853, 8
        %s855 = scalar_lea.vmem %s9, %s854
      $region68: #{critic_twin_forward.1} parent=63 // pred_fallthru
        _
    $region64: #{critic_twin_forward.1} parent=5 // pred_fallthru
      _
  $region6: #{critic_twin_forward.1} parent=0 // loop_footer
    %s19 = sadd.s32 1, %s15
  $region7: #{critic_twin_forward.1} parent=0 // loop_footer_branch
    %14 = sbr.rel target = $region3
  $region8: #{critic_twin_forward.1} parent=0 // loop_exit
    _

</llo_original>
